<compile_context>
chip_gen: v6e
topology: v6e:2x2x1
jax: 0.10.0
libtpu: 0.0.40
codegen_flags: <defaults>
</compile_context>

<pallas_src>
import jax
import jax.numpy as jnp
from jax.experimental import pallas as pl
from jax.experimental.pallas import tpu as pltpu


LANE = 128
# Conservative VMEM budget for streamed blocks + intermediates + resident weights.
# Fits under every generation's default scoped VMEM (16 MiB v5e, 32 MiB v6e/v7x).
_VMEM_BUDGET_BYTES = 10 * 1024 * 1024


def _round_up(x, m):
    return ((x + m - 1) // m) * m


def _cdiv(a, b):
    return (a + b - 1) // b


def _preferred_num_tiles():
    """>= 2 grid steps on v7x so the 'parallel' batch axis feeds both TensorCores."""
    try:
        kind = jax.devices()[0].device_kind.lower()
    except Exception:
        kind = ""
    return 2 if "v7" in kind else 1


def qfunction_kernel(x_ref, w1_ref, b1_ref, w2_ref, b2_ref, w3_ref, b3_ref, out_ref):
    # Layer 1: single fused (TILE_B, in_dim) @ (in_dim, H_pad) MXU dot.
    h1 = jnp.dot(x_ref[...], w1_ref[...], preferred_element_type=jnp.float32)
    h1 = jnp.maximum(h1 + b1_ref[...], 0.0)                     # fp32 bias / ReLU

    # Layer 2: dot in compute dtype, fp32 accumulation / bias / ReLU.
    h2 = jnp.dot(h1.astype(w2_ref.dtype), w2_ref[...],
                 preferred_element_type=jnp.float32)
    h2 = jnp.maximum(h2 + b2_ref[...], 0.0)                     # (TILE_B, H_pad) fp32

    # Layer 3: (H, 1) matmul as VPU multiply + lane reduction; the result is written
    # lane-dense (batch rows on lanes) so the store is a single unmasked vst.
    q = jnp.sum(h2 * w3_ref[...], axis=-1) + b3_ref[0, 0]       # (TILE_B,)
    out_ref[0, 0, :] = q.astype(out_ref.dtype)


def qfunction_forward(obs, action, params, *, tile_b=None,
                      compute_dtype=jnp.bfloat16,
                      allow_xla_fallback=True,
                      xla_fallback_batch=256):
    """Pallas forward of QFunction.trunk(concat([obs, action], dim=1)) -> (B, 1)."""
    w1, b1, w2, b2, w3, b3 = params
    B, obs_dim = obs.shape
    action_dim = action.shape[1]
    in_dim = obs_dim + action_dim
    hidden = w1.shape[1]
    f32 = jnp.float32

    if allow_xla_fallback and B < xla_fallback_batch:
        # Tiny batches: fixed kernel-launch + padding overhead dominates; XLA's fused
        # GEMMs win here on every TPU generation.
        x = jnp.concatenate([obs.astype(f32), action.astype(f32)], axis=1)
        h1 = jnp.maximum(x @ w1 + b1.reshape(1, -1), 0.0)
        h2 = jnp.maximum(h1 @ w2 + b2.reshape(1, -1), 0.0)
        return h2 @ w3 + b3.reshape(1, -1)

    h_pad = _round_up(hidden, LANE)
    itemsize = jnp.dtype(compute_dtype).itemsize
    sub = 8 * (4 // itemsize)                      # sublane packing: 8 fp32 / 16 bf16 rows

    # VMEM cost model (bytes): double-buffered streamed input + output blocks,
    # fp32 h1/h2 intermediates, h1 cast for the second dot, resident weights (x2 bufs).
    per_row = (in_dim * itemsize * 2 + 4 * 2 + 2 * h_pad * 4 + h_pad * itemsize)
    resident = 2 * ((in_dim * h_pad + h_pad * h_pad) * itemsize + 3 * h_pad * 4)
    budget_rows = max(sub, ((_VMEM_BUDGET_BYTES - resident) // per_row) // sub * sub)

    if tile_b is None:
        want_tiles = _preferred_num_tiles() if B >= 2 * sub else 1
        tile_b = _round_up(_cdiv(_round_up(B, sub), want_tiles), sub)
    tile_b = _round_up(max(sub, min(int(tile_b), budget_rows, _round_up(B, sub))), sub)
    b_pad = _round_up(B, tile_b)
    num_tiles = b_pad // tile_b

    def pad2(m, rows, cols):
        return jnp.pad(m, ((0, rows - m.shape[0]), (0, cols - m.shape[1])))

    # Zero-pad hidden to 128 lanes: padded columns of b1/b2/w3 are zero, so the padded
    # network computes exactly the same q values.
    w1p = pad2(w1.astype(f32), in_dim, h_pad).astype(compute_dtype)   # (in_dim, H_pad)
    b1p = pad2(b1.reshape(1, -1).astype(f32), 1, h_pad)               # (1, H_pad) fp32
    w2p = pad2(w2.astype(f32), h_pad, h_pad).astype(compute_dtype)    # (H_pad, H_pad)
    b2p = pad2(b2.reshape(1, -1).astype(f32), 1, h_pad)               # (1, H_pad) fp32
    w3r = pad2(w3.reshape(1, -1).astype(f32), 1, h_pad)               # (1, H_pad) fp32
    b3s = b3.reshape(1, 1).astype(f32)                                # SMEM scalar

    # Concat once here (outside the kernel) -> one fused layer-1 dot in the kernel.
    x = jnp.concatenate([obs.astype(f32), action.astype(f32)], axis=1)
    x = jnp.pad(x, ((0, b_pad - B), (0, 0))).astype(compute_dtype)

    out = pl.pallas_call(
        qfunction_kernel,
        out_shape=jax.ShapeDtypeStruct((num_tiles, 1, tile_b), f32),
        grid=(num_tiles,),
        in_specs=[
            pl.BlockSpec((tile_b, in_dim), lambda i: (i, 0)),     # streamed activations
            pl.BlockSpec((in_dim, h_pad), lambda i: (0, 0)),      # W1 (VMEM-resident)
            pl.BlockSpec((1, h_pad), lambda i: (0, 0)),           # b1
            pl.BlockSpec((h_pad, h_pad), lambda i: (0, 0)),       # W2
            pl.BlockSpec((1, h_pad), lambda i: (0, 0)),           # b2
            pl.BlockSpec((1, h_pad), lambda i: (0, 0)),           # W3 as a row
            pl.BlockSpec(memory_space=pltpu.MemorySpace.SMEM),    # b3 scalar
        ],
        out_specs=pl.BlockSpec((1, 1, tile_b), lambda i: (i, 0, 0)),
        compiler_params=pltpu.CompilerParams(
            dimension_semantics=("parallel",),    # shards batch grid over v7x's 2 TCs
        ),
    )(x, w1p, b1p, w2p, b2p, w3r, b3s)

    return out.reshape(b_pad, 1)[:B]


def init_params(key, obs_dim, action_dim, hidden_dim):
    """Deterministic init mimicking nn.Linear's uniform(-1/sqrt(fan_in), ...)."""
    in_dim = obs_dim + action_dim
    keys = jax.random.split(key, 6)

    def lin(kw, kb, fan_in, fan_out):
        bound = 1.0 / jnp.sqrt(jnp.float32(fan_in))
        w = jax.random.uniform(kw, (fan_in, fan_out), jnp.float32, -bound, bound)
        b = jax.random.uniform(kb, (1, fan_out), jnp.float32, -bound, bound)
        return w, b

    w1, b1 = lin(keys[0], keys[1], in_dim, hidden_dim)
    w2, b2 = lin(keys[2], keys[3], hidden_dim, hidden_dim)
    w3, b3 = lin(keys[4], keys[5], hidden_dim, 1)
    return (w1, b1, w2, b2, w3, b3)


def reference_forward(obs, action, params):
    """Pure-JAX reference of the same computation (matches the torch module)."""
    w1, b1, w2, b2, w3, b3 = params
    x = jnp.concatenate([obs, action], axis=1)
    h1 = jnp.maximum(x @ w1 + b1, 0.0)
    h2 = jnp.maximum(h1 @ w2 + b2, 0.0)
    return h2 @ w3 + b3


if __name__ == "__main__":
    key = jax.random.PRNGKey(0)
    k_obs, k_act, k_par, k2, k3 = jax.random.split(key, 5)

    # Small shapes consistent with the module's forward.
    B, obs_dim, action_dim, hidden_dim = 8, 32, 4, 32
    obs = jax.random.normal(k_obs, (B, obs_dim), jnp.float32)
    action = jax.random.normal(k_act, (B, action_dim), jnp.float32)
    params = init_params(k_par, obs_dim, action_dim, hidden_dim)

    # 1) Tiny batch, fp32 compute dtype, kernel path forced (tight numeric check).
    out = jax.block_until_ready(
        qfunction_forward(obs, action, params, compute_dtype=jnp.float32,
                          allow_xla_fallback=False))
    ref = reference_forward(obs, action, params)
    assert out.shape == (B, 1), out.shape
    assert jnp.allclose(out, ref, atol=1e-4, rtol=1e-4), \
        float(jnp.max(jnp.abs(out - ref)))

    # 2) Multi-tile grid with ragged tail, fp32 compute dtype.
    B2 = 272
    obs2 = jax.random.normal(jax.random.fold_in(k2, 0), (B2, obs_dim), jnp.float32)
    act2 = jax.random.normal(jax.random.fold_in(k2, 1), (B2, action_dim), jnp.float32)
    out2 = jax.block_until_ready(
        qfunction_forward(obs2, act2, params, tile_b=128,
                          compute_dtype=jnp.float32, allow_xla_fallback=False))
    ref2 = reference_forward(obs2, act2, params)
    assert out2.shape == (B2, 1), out2.shape
    assert jnp.allclose(out2, ref2, atol=1e-4, rtol=1e-4), \
        float(jnp.max(jnp.abs(out2 - ref2)))

    # 3) Default path: bf16 MXU dots, auto (generation-aware) tiling; loose check.
    B3 = 1024
    obs3 = jax.random.normal(jax.random.fold_in(k3, 0), (B3, obs_dim), jnp.float32)
    act3 = jax.random.normal(jax.random.fold_in(k3, 1), (B3, action_dim), jnp.float32)
    out3 = jax.block_until_ready(qfunction_forward(obs3, act3, params))
    ref3 = reference_forward(obs3, act3, params)
    assert out3.shape == (B3, 1), out3.shape
    assert float(jnp.max(jnp.abs(out3 - ref3))) < 0.1, \
        float(jnp.max(jnp.abs(out3 - ref3)))

    print("KERNEL_OK")
</pallas_src>

<mosaic_0001>
module attributes {stable_mosaic.version = 11 : i64} {
  func.func @qfunction_kernel(%arg0: i32, %arg1: memref<8x36xf32, #tpu.memory_space<vmem>>, %arg2: memref<36x128xf32, #tpu.memory_space<vmem>>, %arg3: memref<1x128xf32, #tpu.memory_space<vmem>>, %arg4: memref<128x128xf32, #tpu.memory_space<vmem>>, %arg5: memref<1x128xf32, #tpu.memory_space<vmem>>, %arg6: memref<1x128xf32, #tpu.memory_space<vmem>>, %arg7: memref<1x1xf32, #tpu.memory_space<smem>>, %arg8: memref<1x1x8xf32, #tpu.memory_space<vmem>>) attributes {dimension_semantics = [#tpu.dimension_semantics<parallel>], iteration_bounds = array<i64: 1>, scalar_prefetch = 0 : i64, scratch_operands = 0 : i64, tpu.core_type = #tpu.core_type<tc>, window_params = [{transform_indices = @transform_0, window_bounds = array<i64: 8, 36>}, {pipeline_mode = #tpu.pipeline_mode<synchronous>, transform_indices = @transform_1, window_bounds = array<i64: 36, 128>}, {pipeline_mode = #tpu.pipeline_mode<synchronous>, transform_indices = @transform_2, window_bounds = array<i64: 1, 128>}, {pipeline_mode = #tpu.pipeline_mode<synchronous>, transform_indices = @transform_3, window_bounds = array<i64: 128, 128>}, {pipeline_mode = #tpu.pipeline_mode<synchronous>, transform_indices = @transform_4, window_bounds = array<i64: 1, 128>}, {pipeline_mode = #tpu.pipeline_mode<synchronous>, transform_indices = @transform_5, window_bounds = array<i64: 1, 128>}, {transform_indices = @transform_6, window_bounds = array<i64: 1, 1>}, {transform_indices = @transform_7, window_bounds = array<i64: 1, 1, 8>}]} {
    %c0 = arith.constant 0 : index
    %c0_0 = arith.constant 0 : index
    %0 = vector.load %arg1[%c0, %c0_0] : memref<8x36xf32, #tpu.memory_space<vmem>>, vector<8x36xf32>
    %c0_1 = arith.constant 0 : index
    %c0_2 = arith.constant 0 : index
    %1 = vector.load %arg2[%c0_1, %c0_2] : memref<36x128xf32, #tpu.memory_space<vmem>>, vector<36x128xf32>
    %cst = arith.constant dense<0.000000e+00> : vector<8x128xf32>
    %2 = tpu.matmul %0, %1, %cst {dimension_numbers = #tpu.dot_dimension_numbers<[1], [0], [0], [1], [0, 0, 1, 1], [], []>} : vector<8x36xf32>, vector<36x128xf32>, vector<8x128xf32> -> vector<8x128xf32>
    %c0_3 = arith.constant 0 : index
    %c0_4 = arith.constant 0 : index
    %3 = vector.load %arg3[%c0_3, %c0_4] : memref<1x128xf32, #tpu.memory_space<vmem>>, vector<1x128xf32>
    %4 = vector.broadcast %3 : vector<1x128xf32> to vector<8x128xf32>
    %5 = arith.addf %2, %4 : vector<8x128xf32>
    %cst_5 = arith.constant 0.000000e+00 : f32
    %6 = vector.broadcast %cst_5 : f32 to vector<8x128xf32>
    %7 = arith.maximumf %5, %6 : vector<8x128xf32>
    %c0_6 = arith.constant 0 : index
    %c0_7 = arith.constant 0 : index
    %8 = vector.load %arg4[%c0_6, %c0_7] : memref<128x128xf32, #tpu.memory_space<vmem>>, vector<128x128xf32>
    %cst_8 = arith.constant dense<0.000000e+00> : vector<8x128xf32>
    %9 = tpu.matmul %7, %8, %cst_8 {dimension_numbers = #tpu.dot_dimension_numbers<[1], [0], [0], [1], [0, 0, 1, 1], [], []>} : vector<8x128xf32>, vector<128x128xf32>, vector<8x128xf32> -> vector<8x128xf32>
    %c0_9 = arith.constant 0 : index
    %c0_10 = arith.constant 0 : index
    %10 = vector.load %arg5[%c0_9, %c0_10] : memref<1x128xf32, #tpu.memory_space<vmem>>, vector<1x128xf32>
    %11 = vector.broadcast %10 : vector<1x128xf32> to vector<8x128xf32>
    %12 = arith.addf %9, %11 : vector<8x128xf32>
    %cst_11 = arith.constant 0.000000e+00 : f32
    %13 = vector.broadcast %cst_11 : f32 to vector<8x128xf32>
    %14 = arith.maximumf %12, %13 : vector<8x128xf32>
    %c0_12 = arith.constant 0 : index
    %c0_13 = arith.constant 0 : index
    %15 = vector.load %arg6[%c0_12, %c0_13] : memref<1x128xf32, #tpu.memory_space<vmem>>, vector<1x128xf32>
    %16 = vector.broadcast %15 : vector<1x128xf32> to vector<8x128xf32>
    %17 = arith.mulf %14, %16 : vector<8x128xf32>
    %cst_14 = arith.constant dense<0.000000e+00> : vector<8xf32>
    %18 = vector.multi_reduction <add>, %17, %cst_14 [1] : vector<8x128xf32> to vector<8xf32>
    %c0_15 = arith.constant 0 : index
    %c0_16 = arith.constant 0 : index
    %19 = memref.load %arg7[%c0_15, %c0_16] : memref<1x1xf32, #tpu.memory_space<smem>>
    %20 = vector.broadcast %19 : f32 to vector<8xf32>
    %21 = arith.addf %18, %20 : vector<8xf32>
    %c0_17 = arith.constant 0 : index
    %c0_18 = arith.constant 0 : index
    %c0_19 = arith.constant 0 : index
    %22 = vector.load %arg8[%c0_17, %c0_18, %c0_19] : memref<1x1x8xf32, #tpu.memory_space<vmem>>, vector<1x1x8xf32>
    %23 = vector.shape_cast %22 : vector<1x1x8xf32> to vector<8xf32>
    %24 = vector.shape_cast %21 : vector<8xf32> to vector<1x1x8xf32>
    tpu.vector_store %arg8[%c0_17, %c0_18, %c0_19], %24 {strides = array<i32>} : memref<1x1x8xf32, #tpu.memory_space<vmem>>, vector<1x1x8xf32>,
    return
  }
  func.func @transform_0(%arg0: i32) -> (i32, i32) {
    %c0_i32 = arith.constant 0 : i32
    %c0_i32_0 = arith.constant 0 : i32
    return %arg0, %c0_i32 : i32, i32
  }
  func.func @transform_1(%arg0: i32) -> (i32, i32) {
    %c0_i32 = arith.constant 0 : i32
    %c0_i32_0 = arith.constant 0 : i32
    %c0_i32_1 = arith.constant 0 : i32
    return %c0_i32, %c0_i32_0 : i32, i32
  }
  func.func @transform_2(%arg0: i32) -> (i32, i32) {
    %c0_i32 = arith.constant 0 : i32
    %c0_i32_0 = arith.constant 0 : i32
    %c0_i32_1 = arith.constant 0 : i32
    return %c0_i32, %c0_i32_0 : i32, i32
  }
  func.func @transform_3(%arg0: i32) -> (i32, i32) {
    %c0_i32 = arith.constant 0 : i32
    %c0_i32_0 = arith.constant 0 : i32
    %c0_i32_1 = arith.constant 0 : i32
    return %c0_i32, %c0_i32_0 : i32, i32
  }
  func.func @transform_4(%arg0: i32) -> (i32, i32) {
    %c0_i32 = arith.constant 0 : i32
    %c0_i32_0 = arith.constant 0 : i32
    %c0_i32_1 = arith.constant 0 : i32
    return %c0_i32, %c0_i32_0 : i32, i32
  }
  func.func @transform_5(%arg0: i32) -> (i32, i32) {
    %c0_i32 = arith.constant 0 : i32
    %c0_i32_0 = arith.constant 0 : i32
    %c0_i32_1 = arith.constant 0 : i32
    return %c0_i32, %c0_i32_0 : i32, i32
  }
  func.func @transform_6(%arg0: i32) -> (i32, i32) {
    %c0_i32 = arith.constant 0 : i32
    %c0_i32_0 = arith.constant 0 : i32
    %c0_i32_1 = arith.constant 0 : i32
    return %c0_i32, %c0_i32_0 : i32, i32
  }
  func.func @transform_7(%arg0: i32) -> (i32, i32, i32) {
    %c0_i32 = arith.constant 0 : i32
    %c0_i32_0 = arith.constant 0 : i32
    %c0_i32_1 = arith.constant 0 : i32
    return %arg0, %c0_i32, %c0_i32_0 : i32, i32, i32
  }
}

</mosaic_0001>

<llo_original>
// kernel: tpu_custom_call.1
$region0: #{tpu_custom_call.1}
  #allocation0 [shape = 'u32[]', space=smem, size = 0x4, offset = 0x4, fixed_abs, tag = 'smem constant byte address 0x4 - core index']
  #allocation1 [shape = 'u32[144,128]{1,0:T(1,128)}', space=vmem, size = 0x12000, scoped, tag = 'internal scratch']
  #allocation2 [shape = 'f32[1,1]{1,0:T(1,128)S(6)}', space=smem, size = 0x200, scoped, tag = 'scoped memory for tpu_custom_call.1']
  %s0 = inlined_call_operand.hbm [shape: f32[8,36], index: 0, kind: input, shape index: {}]
  %s1 = inlined_call_operand.hbm [shape: f32[36,128], index: 1, kind: input, shape index: {}]
  %s2 = inlined_call_operand.vmem [shape: f32[1,128], index: 2, kind: input, shape index: {}]
  %s3 = inlined_call_operand.hbm [shape: f32[128,128], index: 3, kind: input, shape index: {}]
  %s4 = inlined_call_operand.vmem [shape: f32[1,128], index: 4, kind: input, shape index: {}]
  %s5 = inlined_call_operand.vmem [shape: f32[1,128], index: 5, kind: input, shape index: {}]
  %s6 = inlined_call_operand.<no memory space> [shape: f32[1,1], index: 6, kind: input, shape index: {}]
  %s7 = inlined_call_operand.hbm [shape: f32[1,1,8], index: 7, kind: output, shape index: {}]
  %s8 = sld [smem:[#allocation0]]
  $region50: #{tpu_custom_call.1} parent=0
    _
  %s10 = ssub.s32 1, %s8
  %s11 = scalar_select 0, %s10, %s8
  %12 = sst [smem:[#allocation2]] %s6
  $region1: #{tpu_custom_call.1} parent=0
    #allocation3 [shape = 'u8[4096]{0}', space=vmem, size = 0x1000, scoped, tag = 'input window, operand 0, single buffered']
    #allocation4 [shape = 's32[1]{0}', space=sflag, size = 0x4, scoped, tag = 'scoped memory for tpu_custom_call.1']
    #allocation5 [shape = 's32[1]{0}', space=sflag, size = 0x4, scoped, tag = 'scoped memory for tpu_custom_call.1']
    #allocation6 [shape = 'u8[20480]{0}', space=vmem, size = 0x5000, scoped, tag = 'input window, operand 1, single buffered']
    #allocation7 [shape = 's32[1]{0}', space=sflag, size = 0x4, scoped, tag = 'scoped memory for tpu_custom_call.1']
    #allocation8 [shape = 'u8[65536]{0}', space=vmem, size = 0x10000, scoped, tag = 'input window, operand 3, single buffered']
    #allocation9 [shape = 'u8[512]{0}', space=vmem, size = 0x400, scoped, tag = 'output window, operand 0, single buffered']
    %13 = vsyncpa [#allocation4], 0
    %14 = vsyncpa [#allocation7], 0
    %15 = vsyncpa [#allocation5], 0
    // Predicated region
    $region2: #{tpu_custom_call.1} parent=1 // pred_check
      _
    $region3: #{tpu_custom_call.1} parent=1 // pred_check_branch
      %17 = sbr.rel (0) target = $region5
    $region4: #{tpu_custom_call.1} parent=1 // pred_region
      %s19 = ssub.s32 128, 128
      %20 = vsyncadd [#allocation4], %s19
      %s22 = sshll.u32 [#allocation3], 4
      %s23 = int_to_ptr.vmem [resolvable:$true] %s22
      %25 = dma.hbm_to_vmem [thread:$0]  %s0, 128, %s23, [#allocation4]
    $region5: #{tpu_custom_call.1} parent=1 // pred_fallthru
      _
    // Predicated region
    $region6: #{tpu_custom_call.1} parent=1 // pred_check
      _
    $region7: #{tpu_custom_call.1} parent=1 // pred_check_branch
      %27 = sbr.rel (0) target = $region9
    $region8: #{tpu_custom_call.1} parent=1 // pred_region
      %s29 = ssub.s32 640, 640
      %30 = vsyncadd [#allocation7], %s29
      %s31 = sshll.u32 [#allocation6], 4
      %s32 = int_to_ptr.vmem [resolvable:$true] %s31
      %37 = dma.hbm_to_vmem [thread:$0]  %s1, 640, %s32, [#allocation7], 128, 128, 8
    $region9: #{tpu_custom_call.1} parent=1 // pred_fallthru
      _
    // Predicated region
    $region10: #{tpu_custom_call.1} parent=1 // pred_check
      _
    $region11: #{tpu_custom_call.1} parent=1 // pred_check_branch
      %39 = sbr.rel (0) target = $region13
    $region12: #{tpu_custom_call.1} parent=1 // pred_region
      _
    $region13: #{tpu_custom_call.1} parent=1 // pred_fallthru
      _
    // Predicated region
    $region14: #{tpu_custom_call.1} parent=1 // pred_check
      _
    $region15: #{tpu_custom_call.1} parent=1 // pred_check_branch
      %41 = sbr.rel (0) target = $region17
    $region16: #{tpu_custom_call.1} parent=1 // pred_region
      %s43 = ssub.s32 2048, 2048
      %44 = vsyncadd [#allocation7], %s43
      %s45 = sshll.u32 [#allocation8], 4
      %s46 = int_to_ptr.vmem [resolvable:$true] %s45
      %51 = dma.hbm_to_vmem [thread:$0]  %s3, 2048, %s46, [#allocation7], 128, 128, 8
    $region17: #{tpu_custom_call.1} parent=1 // pred_fallthru
      _
    // Predicated region
    $region18: #{tpu_custom_call.1} parent=1 // pred_check
      _
    $region19: #{tpu_custom_call.1} parent=1 // pred_check_branch
      %53 = sbr.rel (0) target = $region21
    $region20: #{tpu_custom_call.1} parent=1 // pred_region
      _
    $region21: #{tpu_custom_call.1} parent=1 // pred_fallthru
      _
    // Predicated region
    $region22: #{tpu_custom_call.1} parent=1 // pred_check
      _
    $region23: #{tpu_custom_call.1} parent=1 // pred_check_branch
      %55 = sbr.rel (0) target = $region25
    $region24: #{tpu_custom_call.1} parent=1 // pred_region
      _
    $region25: #{tpu_custom_call.1} parent=1 // pred_fallthru
      _
    // Predicated region
    $region26: #{tpu_custom_call.1} parent=1 // pred_check
      _
    $region27: #{tpu_custom_call.1} parent=1 // pred_check_branch
      %57 = sbr.rel (0) target = $region29
    $region28: #{tpu_custom_call.1} parent=1 // pred_region
      _
    $region29: #{tpu_custom_call.1} parent=1 // pred_fallthru
      _
    // Predicated region
    $region30: #{tpu_custom_call.1} parent=1 // pred_check
      _
    $region31: #{tpu_custom_call.1} parent=1 // pred_check_branch
      %59 = sbr.rel (0) target = $region33
    $region32: #{tpu_custom_call.1} parent=1 // pred_region
      %60 = dma.done [#allocation4], 128
    $region33: #{tpu_custom_call.1} parent=1 // pred_fallthru
      _
    // Predicated region
    $region34: #{tpu_custom_call.1} parent=1 // pred_check
      _
    $region35: #{tpu_custom_call.1} parent=1 // pred_check_branch
      %62 = sbr.rel (0) target = $region37
    $region36: #{tpu_custom_call.1} parent=1 // pred_region
      %63 = dma.done [#allocation7], 640
    $region37: #{tpu_custom_call.1} parent=1 // pred_fallthru
      _
    // Predicated region
    $region38: #{tpu_custom_call.1} parent=1 // pred_check
      _
    $region39: #{tpu_custom_call.1} parent=1 // pred_check_branch
      %65 = sbr.rel (0) target = $region41
    $region40: #{tpu_custom_call.1} parent=1 // pred_region
      %66 = dma.done [#allocation7], 2048
    $region41: #{tpu_custom_call.1} parent=1 // pred_fallthru
      _
    %v67 = vld [vmem:[#allocation3] sm:$0xff]
    %v68 = vld [vmem:[#allocation6] sm:$0xff]
    %v69 = vld [vmem:[#allocation6 + $0x8] sm:$0xff]
    %v70 = vld [vmem:[#allocation6 + $0x10] sm:$0xff]
    %v71 = vld [vmem:[#allocation6 + $0x18] sm:$0xff]
    %v72 = vld [vmem:[#allocation6 + $0x20] sm:$0xf]
    %v73 = vld [vmem:[%s2] sm:$0x1]
    %v75 = vlaneseq
    %v76 = vshrl.u32 %v75, 7
    %v77 = vsub.s32 0, %v76
    %v78 = vrot.slane %v73, %v77
    %vm80 = vcmask 293888
    %v82 = vsel %vm80, %v67, 0
    %vm84 = vcmask 1043456
    %v86 = vsel %vm84, %v72, 0
    %88 = vmatprep.subr.mxu0 0.0
    %89 = vmatpush1.msra.mxu0 0.0
    %90 = vmatprep.subr.mxu0 0.0
    %91 = vmatpush1.msra.mxu0 0.0
    %92 = vmatprep.subr.mxu0 0.0
    %93 = vmatpush1.msra.mxu0 0.0
    %94 = vmatprep.subr.mxu0 0.0
    %95 = vmatpush1.msra.mxu0 0.0
    %96 = vmatprep.subr.mxu0 0.0
    %97 = vmatpush1.msra.mxu0 0.0
    %98 = vmatprep.subr.mxu0 0.0
    %99 = vmatpush1.msra.mxu0 0.0
    %100 = vmatprep.subr.mxu0 0.0
    %101 = vmatpush1.msra.mxu0 0.0
    %102 = vmatprep.subr.mxu0 0.0
    %103 = vmatpush1.msra.mxu0 0.0
    %104 = vmatprep.subr.mxu0 0.0
    %105 = vmatpush1.msra.mxu0 0.0
    %106 = vmatprep.subr.mxu0 0.0
    %107 = vmatpush1.msra.mxu0 0.0
    %108 = vmatprep.subr.mxu0 0.0
    %109 = vmatpush1.msra.mxu0 0.0
    %110 = vmatprep.subr.mxu0 0.0
    %111 = vmatpush1.msra.mxu0 %v86
    %112 = vmatprep.subr.mxu0 0.0
    %113 = vmatpush1.msra.mxu0 %v71
    %114 = vmatprep.subr.mxu0 0.0
    %115 = vmatpush1.msra.mxu0 %v70
    %116 = vmatprep.subr.mxu0 0.0
    %117 = vmatpush1.msra.mxu0 %v69
    %118 = vmatprep.subr.mxu0 0.0
    %119 = vmatpush1.msra.mxu0 %v68
    %120 = vmatprep.subr.mxu0 0.0
    %121 = vmatpush2.msra.mxu0 0.0
    %122 = vmatprep.subr.mxu0 0.0
    %123 = vmatpush2.msra.mxu0 0.0
    %124 = vmatprep.subr.mxu0 0.0
    %125 = vmatpush2.msra.mxu0 0.0
    %126 = vmatprep.subr.mxu0 0.0
    %127 = vmatpush2.msra.mxu0 0.0
    %128 = vmatprep.subr.mxu0 0.0
    %129 = vmatpush2.msra.mxu0 0.0
    %130 = vmatprep.subr.mxu0 0.0
    %131 = vmatpush2.msra.mxu0 0.0
    %132 = vmatprep.subr.mxu0 0.0
    %133 = vmatpush2.msra.mxu0 0.0
    %134 = vmatprep.subr.mxu0 0.0
    %135 = vmatpush2.msra.mxu0 0.0
    %136 = vmatprep.subr.mxu0 0.0
    %137 = vmatpush2.msra.mxu0 0.0
    %138 = vmatprep.subr.mxu0 0.0
    %139 = vmatpush2.msra.mxu0 0.0
    %140 = vmatprep.subr.mxu0 0.0
    %141 = vmatpush2.msra.mxu0 0.0
    %142 = vmatprep.subr.mxu0 0.0
    %143 = vmatpush2.msra.mxu0 0.0
    %144 = vmatprep.subr.mxu0 0.0
    %145 = vmatpush2.msra.mxu0 0.0
    %146 = vmatprep.subr.mxu0 0.0
    %147 = vmatpush2.msra.mxu0 0.0
    %148 = vmatprep.subr.mxu0 0.0
    %149 = vmatpush2.msra.mxu0 0.0
    %150 = vmatprep.subr.mxu0 0.0
    %151 = vmatpush2.msra.mxu0 0.0
    %152 = vmatprep.mubr.f32.mxu0 0.0
    %153 = vmatmul.mubr.f32.gmra.mxu0 %v82
    %v154 = vpop.f32.mrf.mxu0
    %v155 = vadd.f32 %v78, %v154
    %v156 = vpop.f32.mrf.mxu0
    %157 = vdwg.mxu0
    %v158 = vmax.f32 %v155, 0.0
    %v159 = vld [vmem:[#allocation8] sm:$0xff]
    %v160 = vld [vmem:[#allocation8 + $0x8] sm:$0xff]
    %v161 = vld [vmem:[#allocation8 + $0x10] sm:$0xff]
    %v162 = vld [vmem:[#allocation8 + $0x18] sm:$0xff]
    %v163 = vld [vmem:[#allocation8 + $0x20] sm:$0xff]
    %v164 = vld [vmem:[#allocation8 + $0x28] sm:$0xff]
    %v165 = vld [vmem:[#allocation8 + $0x30] sm:$0xff]
    %v166 = vld [vmem:[#allocation8 + $0x38] sm:$0xff]
    %v167 = vld [vmem:[#allocation8 + $0x40] sm:$0xff]
    %v168 = vld [vmem:[#allocation8 + $0x48] sm:$0xff]
    %v169 = vld [vmem:[#allocation8 + $0x50] sm:$0xff]
    %v170 = vld [vmem:[#allocation8 + $0x58] sm:$0xff]
    %v171 = vld [vmem:[#allocation8 + $0x60] sm:$0xff]
    %v172 = vld [vmem:[#allocation8 + $0x68] sm:$0xff]
    %v173 = vld [vmem:[#allocation8 + $0x70] sm:$0xff]
    %v174 = vld [vmem:[#allocation8 + $0x78] sm:$0xff]
    %v175 = vld [vmem:[%s4] sm:$0x1]
    %v177 = vlaneseq
    %v178 = vshrl.u32 %v177, 7
    %v179 = vsub.s32 0, %v178
    %v180 = vrot.slane %v175, %v179
    %182 = vmatprep.subr.mxu0 0.0
    %183 = vmatpush1.msra.mxu0 %v174
    %184 = vmatprep.subr.mxu0 0.0
    %185 = vmatpush1.msra.mxu0 %v173
    %186 = vmatprep.subr.mxu0 0.0
    %187 = vmatpush1.msra.mxu0 %v172
    %188 = vmatprep.subr.mxu0 0.0
    %189 = vmatpush1.msra.mxu0 %v171
    %190 = vmatprep.subr.mxu0 0.0
    %191 = vmatpush1.msra.mxu0 %v170
    %192 = vmatprep.subr.mxu0 0.0
    %193 = vmatpush1.msra.mxu0 %v169
    %194 = vmatprep.subr.mxu0 0.0
    %195 = vmatpush1.msra.mxu0 %v168
    %196 = vmatprep.subr.mxu0 0.0
    %197 = vmatpush1.msra.mxu0 %v167
    %198 = vmatprep.subr.mxu0 0.0
    %199 = vmatpush1.msra.mxu0 %v166
    %200 = vmatprep.subr.mxu0 0.0
    %201 = vmatpush1.msra.mxu0 %v165
    %202 = vmatprep.subr.mxu0 0.0
    %203 = vmatpush1.msra.mxu0 %v164
    %204 = vmatprep.subr.mxu0 0.0
    %205 = vmatpush1.msra.mxu0 %v163
    %206 = vmatprep.subr.mxu0 0.0
    %207 = vmatpush1.msra.mxu0 %v162
    %208 = vmatprep.subr.mxu0 0.0
    %209 = vmatpush1.msra.mxu0 %v161
    %210 = vmatprep.subr.mxu0 0.0
    %211 = vmatpush1.msra.mxu0 %v160
    %212 = vmatprep.subr.mxu0 0.0
    %213 = vmatpush1.msra.mxu0 %v159
    %214 = vmatprep.subr.mxu0 0.0
    %215 = vmatpush2.msra.mxu0 0.0
    %216 = vmatprep.subr.mxu0 0.0
    %217 = vmatpush2.msra.mxu0 0.0
    %218 = vmatprep.subr.mxu0 0.0
    %219 = vmatpush2.msra.mxu0 0.0
    %220 = vmatprep.subr.mxu0 0.0
    %221 = vmatpush2.msra.mxu0 0.0
    %222 = vmatprep.subr.mxu0 0.0
    %223 = vmatpush2.msra.mxu0 0.0
    %224 = vmatprep.subr.mxu0 0.0
    %225 = vmatpush2.msra.mxu0 0.0
    %226 = vmatprep.subr.mxu0 0.0
    %227 = vmatpush2.msra.mxu0 0.0
    %228 = vmatprep.subr.mxu0 0.0
    %229 = vmatpush2.msra.mxu0 0.0
    %230 = vmatprep.subr.mxu0 0.0
    %231 = vmatpush2.msra.mxu0 0.0
    %232 = vmatprep.subr.mxu0 0.0
    %233 = vmatpush2.msra.mxu0 0.0
    %234 = vmatprep.subr.mxu0 0.0
    %235 = vmatpush2.msra.mxu0 0.0
    %236 = vmatprep.subr.mxu0 0.0
    %237 = vmatpush2.msra.mxu0 0.0
    %238 = vmatprep.subr.mxu0 0.0
    %239 = vmatpush2.msra.mxu0 0.0
    %240 = vmatprep.subr.mxu0 0.0
    %241 = vmatpush2.msra.mxu0 0.0
    %242 = vmatprep.subr.mxu0 0.0
    %243 = vmatpush2.msra.mxu0 0.0
    %244 = vmatprep.subr.mxu0 0.0
    %245 = vmatpush2.msra.mxu0 0.0
    %246 = vmatprep.mubr.f32.mxu0 0.0
    %247 = vmatmul.mubr.f32.gmra.mxu0 %v158
    %v248 = vpop.f32.mrf.mxu0
    %v249 = vadd.f32 %v180, %v248
    %v250 = vpop.f32.mrf.mxu0
    %251 = vdwg.mxu0
    %v252 = vmax.f32 %v249, 0.0
    %v253 = vld [vmem:[%s5] sm:$0x1]
    %v255 = vlaneseq
    %v256 = vshrl.u32 %v255, 7
    %v257 = vsub.s32 0, %v256
    %v258 = vrot.slane %v253, %v257
    %v260 = vmul.f32 %v252, %v258
    %261 = vadd.xlane.f32.xlu0 %v260
    %v262 = vpop.xlane.xlu0 %261
    %s263 = sld [smem:[#allocation2]]
    %v264 = vstv %s263
    %v265 = vadd.f32 %v262, %v264
    %v267 = vlaneseq
    %v268 = vand.u32 %v267, 127
    %v269 = vlaneseq
    %v270 = vshrl.u32 %v269, 7
    %v271 = vsub.s32 %v268, %v270
    %v272 = vrot.slane %v265, %v271
    %vm274 = vcmask 57344
    %275 = vst.msk [vmem:[#allocation9] sm:$0x1] %vm274, %v272
    // Predicated region
    $region42: #{tpu_custom_call.1} parent=1 // pred_check
      _
    $region43: #{tpu_custom_call.1} parent=1 // pred_check_branch
      %277 = sbr.rel (0) target = $region45
    $region44: #{tpu_custom_call.1} parent=1 // pred_region
      %s279 = ssub.s32 16, 16
      %280 = vsyncadd [#allocation5], %s279
      %s282 = sshll.u32 [#allocation9], 4
      %s283 = int_to_ptr.vmem [resolvable:$true] %s282
      %285 = dma.vmem_to_hbm [thread:$0]  %s283, 16, %s7, [#allocation5]
    $region45: #{tpu_custom_call.1} parent=1 // pred_fallthru
      _
    // Predicated region
    $region46: #{tpu_custom_call.1} parent=1 // pred_check
      _
    $region47: #{tpu_custom_call.1} parent=1 // pred_check_branch
      %287 = sbr.rel (0) target = $region49
    $region48: #{tpu_custom_call.1} parent=1 // pred_region
      %288 = dma.done [#allocation5], 16
    $region49: #{tpu_custom_call.1} parent=1 // pred_fallthru
      _
    %289 = vsyncpa [#allocation4], 1
    %290 = vsyncpa [#allocation7], 1
    %291 = vsyncpa [#allocation5], 1

</llo_original>
